<compile_context>
chip_gen: v5e
topology: v5e:2x2
jax: 0.10.0
libtpu: 0.0.40
codegen_flags: <defaults>
</compile_context>

<pallas_src>
import functools
import math

import jax
import jax.numpy as jnp
from jax.experimental import pallas as pl
from jax.experimental.pallas import tpu as pltpu


def _mha_head_kernel(x_ref, wqkv_ref, wo_ref, bo_ref, bias_ref, o_ref, acc_ref,
                     *, approx_recip):
    h = pl.program_id(1)
    num_heads = pl.num_programs(1)

    bb, T, d_in = x_ref.shape
    hd = wo_ref.shape[1]
    d_out = wo_ref.shape[2]

    @pl.when(h == 0)
    def _():
        acc_ref[...] = jnp.zeros_like(acc_ref)

    x2 = x_ref[...].reshape(bb * T, d_in)                                   # (rows, d_in) bf16

    # Per-head projections: weights arrive already head-sliced via the BlockSpec
    # index_map, so there is no in-kernel lane slicing of a fused QKV result.
    q = jnp.dot(x2, wqkv_ref[0, 0], preferred_element_type=jnp.float32)    # (rows, hd) f32
    k = jnp.dot(x2, wqkv_ref[0, 1], preferred_element_type=jnp.float32)
    v = jnp.dot(x2, wqkv_ref[0, 2], preferred_element_type=jnp.float32)

    q = q.reshape(bb, T, hd).astype(jnp.bfloat16)    # 1/sqrt(hd) already folded into Wq
    k = k.reshape(bb, T, hd).astype(jnp.bfloat16)
    v = v.reshape(bb, T, hd).astype(jnp.bfloat16)

    # scores, batched over the bb packed batch rows; causal bias is a resident f32 input.
    s = jnp.einsum("bqd,bkd->bqk", q, k, preferred_element_type=jnp.float32)  # (bb, T, T)
    s = s + bias_ref[...][None, :, :]

    # numerically stable softmax, normalization deferred past p @ v
    m = jnp.max(s, axis=-1, keepdims=True)
    p = jnp.exp(s - m)
    l = jnp.sum(p, axis=-1, keepdims=True)                                  # (bb, T, 1)

    ctx = jnp.einsum("bqk,bkd->bqd", p.astype(jnp.bfloat16), v,
                     preferred_element_type=jnp.float32)                    # (bb, T, hd) f32
    if approx_recip:
        ctx = ctx * pl.reciprocal(l, approx=True)                           # EUP slot
    else:
        ctx = ctx / l

    # this head's contribution to the output projection, accumulated into a lane-dense
    # (rows, d_out) f32 scratch
    acc_ref[...] += jnp.dot(ctx.reshape(bb * T, hd).astype(jnp.bfloat16), wo_ref[0],
                            preferred_element_type=jnp.float32)

    @pl.when(h == num_heads - 1)
    def _():
        out = acc_ref[...] + bo_ref[...]                                    # bias (1, d_out)
        o_ref[...] = out.reshape(bb, T, d_out).astype(o_ref.dtype)


def mha_efficient_pallas(x, wq, wk, wv, wo, bo, *, num_heads, batch_block=None,
                         out_dtype=jnp.float32, approx_recip=True):
    B, T, d_in = x.shape
    d_out = wq.shape[1]
    assert d_out % num_heads == 0, "d_out must be divisible by num_heads"
    head_dim = d_out // num_heads

    # Pack batch rows so each step has ~256 M-rows (v6e/v7x MXU height); keep the parallel
    # batch axis at extent >= 2 so both v7x TensorCores get work.
    if batch_block is None:
        batch_block = max(1, 256 // max(T, 1))
    bb = max(1, min(batch_block, B))
    if B >= 2:
        bb = min(bb, max(1, B // 2))
    while B % bb:
        bb -= 1

    scale = 1.0 / math.sqrt(head_dim)

    def to_heads(w):                                    # (d_in, d_out) -> (H, d_in, hd)
        return w.reshape(d_in, num_heads, head_dim).transpose(1, 0, 2)

    # (H, 3, d_in, hd): per-head [Wq*scale, Wk, Wv]; head selected by the grid index_map.
    wqkv = jnp.stack([to_heads(wq * scale), to_heads(wk), to_heads(wv)], axis=1)
    wqkv_bf = wqkv.astype(jnp.bfloat16)
    # (H, hd, d_out): rows of Wo belonging to head h.
    wo_h = wo.reshape(num_heads, head_dim, d_out).astype(jnp.bfloat16)
    bo_f32 = jnp.asarray(bo).reshape(1, d_out).astype(jnp.float32)

    # causal additive bias, hoisted out of the kernel (computed once, stays resident)
    row = jax.lax.broadcasted_iota(jnp.int32, (T, T), 0)
    col = jax.lax.broadcasted_iota(jnp.int32, (T, T), 1)
    bias = jnp.where(col > row, jnp.float32(-1e30), jnp.float32(0.0))       # keep f32

    x_bf = x.astype(jnp.bfloat16)

    # VMEM budget from the actual tile sizes (double-buffered I/O + scratch + temporaries).
    rows = bb * T
    est = (2 * rows * d_in * 2              # x block (bf16) x2
           + 2 * 3 * d_in * head_dim * 2    # per-head qkv weights x2
           + 2 * head_dim * d_out * 2       # per-head wo rows x2
           + 2 * T * T * 4                  # causal bias x2
           + 2 * d_out * 4                  # bo x2
           + 2 * rows * d_out * 4           # out block (f32) x2
           + rows * d_out * 4               # accumulator scratch
           + 3 * rows * head_dim * 6        # q/k/v f32 + bf16 temporaries
           + 2 * bb * T * T * 4             # s, p
           + rows * d_out * 4               # partial out-proj product
           + rows * head_dim * 4)           # ctx
    vmem_limit = int(min(max(2 * est, 32 * 1024 * 1024), 128 * 1024 * 1024))

    kernel = functools.partial(_mha_head_kernel, approx_recip=approx_recip)

    return pl.pallas_call(
        kernel,
        out_shape=jax.ShapeDtypeStruct((B, T, d_out), out_dtype),
        grid_spec=pltpu.PrefetchScalarGridSpec(
            num_scalar_prefetch=0,
            grid=(B // bb, num_heads),                       # head = inner reduction axis
            in_specs=[
                pl.BlockSpec((bb, T, d_in), lambda b, h: (b, 0, 0)),          # x rows
                pl.BlockSpec((1, 3, d_in, head_dim), lambda b, h: (h, 0, 0, 0)),  # qkv wts
                pl.BlockSpec((1, head_dim, d_out), lambda b, h: (h, 0, 0)),   # wo rows
                pl.BlockSpec((1, d_out), lambda b, h: (0, 0)),                # out bias
                pl.BlockSpec((T, T), lambda b, h: (0, 0)),                    # causal bias
            ],
            out_specs=pl.BlockSpec((bb, T, d_out), lambda b, h: (b, 0, 0)),
            scratch_shapes=[pltpu.VMEM((bb * T, d_out), jnp.float32)],
        ),
        compiler_params=pltpu.CompilerParams(
            dimension_semantics=("parallel", "arbitrary"),
            vmem_limit_bytes=vmem_limit,
        ),
    )(x_bf, wqkv_bf, wo_h, bo_f32, bias)


def mha_reference(x, wq, wk, wv, wo, bo, *, num_heads):
    # pure-JAX f32 reference mirroring the PyTorch forward (eval mode: dropout = identity)
    B, T, d_in = x.shape
    d_out = wq.shape[1]
    head_dim = d_out // num_heads

    def proj(w):
        y = x @ w                                              # (B, T, d_out)
        return y.reshape(B, T, num_heads, head_dim).transpose(0, 2, 1, 3)

    q, k, v = proj(wq), proj(wk), proj(wv)                     # (B, H, T, hd)
    s = jnp.einsum("bhqd,bhkd->bhqk", q, k)
    mask = jnp.triu(jnp.ones((T, T), bool), k=1)
    s = jnp.where(mask[None, None], -jnp.inf, s)
    p = jax.nn.softmax(s / math.sqrt(head_dim), axis=-1)
    ctx = jnp.einsum("bhqk,bhkd->bhqd", p, v)
    ctx = ctx.transpose(0, 2, 1, 3).reshape(B, T, d_out)
    return ctx @ wo + bo[0]


if __name__ == "__main__":
    # small config consistent with the module
    B, T = 2, 8
    d_in, d_out = 32, 32
    num_heads = 4

    key = jax.random.PRNGKey(0)
    kx, kq, kk, kv, ko, kb = jax.random.split(key, 6)

    x = jax.random.normal(kx, (B, T, d_in), jnp.float32)
    # Linear weights (stored transposed: (in, out)) initialized deterministically.
    wq = jax.random.normal(kq, (d_in, d_out), jnp.float32) * 0.1
    wk = jax.random.normal(kk, (d_in, d_out), jnp.float32) * 0.1
    wv = jax.random.normal(kv, (d_in, d_out), jnp.float32) * 0.1
    wo = jax.random.normal(ko, (d_out, d_out), jnp.float32) * 0.1
    bo = jax.random.normal(kb, (1, d_out), jnp.float32) * 0.1

    out = mha_efficient_pallas(x, wq, wk, wv, wo, bo, num_heads=num_heads)
    out = jax.block_until_ready(out)

    ref = mha_reference(x, wq, wk, wv, wo, bo, num_heads=num_heads)
    assert out.shape == (B, T, d_out)
    # bf16 MXU operands + approx reciprocal -> compare vs f32 reference at bf16 tolerance
    assert jnp.allclose(out, ref, atol=5e-2, rtol=5e-2), "mismatch vs reference"

    print("KERNEL_OK")
</pallas_src>

<mosaic_0001>
module attributes {stable_mosaic.version = 11 : i64} {
  func.func @_mha_head_kernel(%arg0: i32, %arg1: i32, %arg2: memref<1x8x32xbf16, #tpu.memory_space<vmem>>, %arg3: memref<1x3x32x8xbf16, #tpu.memory_space<vmem>>, %arg4: memref<1x8x32xbf16, #tpu.memory_space<vmem>>, %arg5: memref<1x32xf32, #tpu.memory_space<vmem>>, %arg6: memref<8x8xf32, #tpu.memory_space<vmem>>, %arg7: memref<1x8x32xf32, #tpu.memory_space<vmem>>, %arg8: memref<8x32xf32, #tpu.memory_space<vmem>>) attributes {dimension_semantics = [#tpu.dimension_semantics<parallel>, #tpu.dimension_semantics<arbitrary>], iteration_bounds = array<i64: 2, 4>, scalar_prefetch = 0 : i64, scratch_operands = 1 : i64, tpu.core_type = #tpu.core_type<tc>, window_params = [{transform_indices = @transform_0, window_bounds = array<i64: 1, 8, 32>}, {transform_indices = @transform_1, window_bounds = array<i64: 1, 3, 32, 8>}, {transform_indices = @transform_2, window_bounds = array<i64: 1, 8, 32>}, {pipeline_mode = #tpu.pipeline_mode<synchronous>, transform_indices = @transform_3, window_bounds = array<i64: 1, 32>}, {pipeline_mode = #tpu.pipeline_mode<synchronous>, transform_indices = @transform_4, window_bounds = array<i64: 8, 8>}, {transform_indices = @transform_5, window_bounds = array<i64: 1, 8, 32>}]} {
    %c0_i32 = arith.constant 0 : i32
    %0 = arith.cmpi eq, %arg1, %c0_i32 : i32
    %1 = arith.extui %0 : i1 to i32
    %c0_i32_0 = arith.constant 0 : i32
    %2 = arith.cmpi ne, %1, %c0_i32_0 : i32
    scf.if %2 {
      %cst_30 = arith.constant 0.000000e+00 : f32
      %47 = vector.broadcast %cst_30 : f32 to vector<8x32xf32>
      %c0_31 = arith.constant 0 : index
      %c0_32 = arith.constant 0 : index
      %48 = vector.load %arg8[%c0_31, %c0_32] : memref<8x32xf32, #tpu.memory_space<vmem>>, vector<8x32xf32>
      tpu.vector_store %arg8[%c0_31, %c0_32], %47 {strides = array<i32>} : memref<8x32xf32, #tpu.memory_space<vmem>>, vector<8x32xf32>,
    } else {
    }
    %c0 = arith.constant 0 : index
    %c0_1 = arith.constant 0 : index
    %c0_2 = arith.constant 0 : index
    %3 = vector.load %arg2[%c0, %c0_1, %c0_2] : memref<1x8x32xbf16, #tpu.memory_space<vmem>>, vector<1x8x32xbf16>
    %4 = vector.shape_cast %3 : vector<1x8x32xbf16> to vector<8x32xbf16>
    %c0_3 = arith.constant 0 : index
    %c0_4 = arith.constant 0 : index
    %c0_5 = arith.constant 0 : index
    %c0_6 = arith.constant 0 : index
    %5 = vector.load %arg3[%c0_3, %c0_4, %c0_5, %c0_6] : memref<1x3x32x8xbf16, #tpu.memory_space<vmem>>, vector<1x1x32x8xbf16>
    %6 = vector.shape_cast %5 : vector<1x1x32x8xbf16> to vector<32x8xbf16>
    %cst = arith.constant dense<0.000000e+00> : vector<8x8xf32>
    %7 = tpu.matmul %4, %6, %cst {dimension_numbers = #tpu.dot_dimension_numbers<[1], [0], [0], [1], [0, 0, 1, 1], [], []>} : vector<8x32xbf16>, vector<32x8xbf16>, vector<8x8xf32> -> vector<8x8xf32>
    %c0_7 = arith.constant 0 : index
    %c1 = arith.constant 1 : index
    %c0_8 = arith.constant 0 : index
    %c0_9 = arith.constant 0 : index
    %8 = vector.load %arg3[%c0_7, %c1, %c0_8, %c0_9] : memref<1x3x32x8xbf16, #tpu.memory_space<vmem>>, vector<1x1x32x8xbf16>
    %9 = vector.shape_cast %8 : vector<1x1x32x8xbf16> to vector<32x8xbf16>
    %cst_10 = arith.constant dense<0.000000e+00> : vector<8x8xf32>
    %10 = tpu.matmul %4, %9, %cst_10 {dimension_numbers = #tpu.dot_dimension_numbers<[1], [0], [0], [1], [0, 0, 1, 1], [], []>} : vector<8x32xbf16>, vector<32x8xbf16>, vector<8x8xf32> -> vector<8x8xf32>
    %c0_11 = arith.constant 0 : index
    %c2 = arith.constant 2 : index
    %c0_12 = arith.constant 0 : index
    %c0_13 = arith.constant 0 : index
    %11 = vector.load %arg3[%c0_11, %c2, %c0_12, %c0_13] : memref<1x3x32x8xbf16, #tpu.memory_space<vmem>>, vector<1x1x32x8xbf16>
    %12 = vector.shape_cast %11 : vector<1x1x32x8xbf16> to vector<32x8xbf16>
    %cst_14 = arith.constant dense<0.000000e+00> : vector<8x8xf32>
    %13 = tpu.matmul %4, %12, %cst_14 {dimension_numbers = #tpu.dot_dimension_numbers<[1], [0], [0], [1], [0, 0, 1, 1], [], []>} : vector<8x32xbf16>, vector<32x8xbf16>, vector<8x8xf32> -> vector<8x8xf32>
    %14 = vector.shape_cast %7 : vector<8x8xf32> to vector<1x8x8xf32>
    %15 = arith.truncf %14 : vector<1x8x8xf32> to vector<1x8x8xbf16>
    %16 = vector.shape_cast %10 : vector<8x8xf32> to vector<1x8x8xf32>
    %17 = arith.truncf %16 : vector<1x8x8xf32> to vector<1x8x8xbf16>
    %18 = vector.shape_cast %13 : vector<8x8xf32> to vector<1x8x8xf32>
    %19 = arith.truncf %18 : vector<1x8x8xf32> to vector<1x8x8xbf16>
    "tpu.trace_start"() <{level = 10 : i32, message = "bqd,bkd->bqk"}> : () -> ()
    %cst_15 = arith.constant dense<0.000000e+00> : vector<1x8x8xf32>
    %20 = tpu.matmul %15, %17, %cst_15 {dimension_numbers = #tpu.dot_dimension_numbers<[2], [2], [1], [1], [0, 0, 0, 1, 1, 1], [0], [0]>} : vector<1x8x8xbf16>, vector<1x8x8xbf16>, vector<1x8x8xf32> -> vector<1x8x8xf32>
    "tpu.trace_stop"() : () -> ()
    %c0_16 = arith.constant 0 : index
    %c0_17 = arith.constant 0 : index
    %21 = vector.load %arg6[%c0_16, %c0_17] : memref<8x8xf32, #tpu.memory_space<vmem>>, vector<8x8xf32>
    %22 = vector.shape_cast %21 : vector<8x8xf32> to vector<1x8x8xf32>
    %23 = arith.addf %20, %22 : vector<1x8x8xf32>
    %cst_18 = arith.constant dense<0xFF800000> : vector<1x8xf32>
    %24 = vector.multi_reduction <maximumf>, %23, %cst_18 [2] : vector<1x8x8xf32> to vector<1x8xf32>
    %25 = vector.shape_cast %24 : vector<1x8xf32> to vector<1x8x1xf32>
    %26 = vector.broadcast %25 : vector<1x8x1xf32> to vector<1x8x8xf32>
    %27 = arith.subf %23, %26 : vector<1x8x8xf32>
    %28 = math.exp %27 : vector<1x8x8xf32>
    %cst_19 = arith.constant dense<0.000000e+00> : vector<1x8xf32>
    %29 = vector.multi_reduction <add>, %28, %cst_19 [2] : vector<1x8x8xf32> to vector<1x8xf32>
    %30 = vector.shape_cast %29 : vector<1x8xf32> to vector<1x8x1xf32>
    %31 = arith.truncf %28 : vector<1x8x8xf32> to vector<1x8x8xbf16>
    "tpu.trace_start"() <{level = 10 : i32, message = "bqk,bkd->bqd"}> : () -> ()
    %cst_20 = arith.constant dense<0.000000e+00> : vector<1x8x8xf32>
    %32 = tpu.matmul %31, %19, %cst_20 {dimension_numbers = #tpu.dot_dimension_numbers<[2], [1], [1], [2], [0, 0, 0, 1, 1, 2], [0], [0]>} : vector<1x8x8xbf16>, vector<1x8x8xbf16>, vector<1x8x8xf32> -> vector<1x8x8xf32>
    "tpu.trace_stop"() : () -> ()
    %33 = tpu.reciprocal %30 {approx = true} : vector<1x8x1xf32> -> vector<1x8x1xf32>
    %34 = vector.broadcast %33 : vector<1x8x1xf32> to vector<1x8x8xf32>
    %35 = arith.mulf %32, %34 : vector<1x8x8xf32>
    %c0_21 = arith.constant 0 : index
    %c0_22 = arith.constant 0 : index
    %36 = vector.load %arg8[%c0_21, %c0_22] : memref<8x32xf32, #tpu.memory_space<vmem>>, vector<8x32xf32>
    %37 = vector.shape_cast %35 : vector<1x8x8xf32> to vector<8x8xf32>
    %38 = arith.truncf %37 : vector<8x8xf32> to vector<8x8xbf16>
    %c0_23 = arith.constant 0 : index
    %c0_24 = arith.constant 0 : index
    %c0_25 = arith.constant 0 : index
    %39 = vector.load %arg4[%c0_23, %c0_24, %c0_25] : memref<1x8x32xbf16, #tpu.memory_space<vmem>>, vector<1x8x32xbf16>
    %40 = vector.shape_cast %39 : vector<1x8x32xbf16> to vector<8x32xbf16>
    %cst_26 = arith.constant dense<0.000000e+00> : vector<8x32xf32>
    %41 = tpu.matmul %38, %40, %cst_26 {dimension_numbers = #tpu.dot_dimension_numbers<[1], [0], [0], [1], [0, 0, 1, 1], [], []>} : vector<8x8xbf16>, vector<8x32xbf16>, vector<8x32xf32> -> vector<8x32xf32>
    %42 = arith.addf %36, %41 : vector<8x32xf32>
    %c0_27 = arith.constant 0 : index
    %c0_28 = arith.constant 0 : index
    %43 = vector.load %arg8[%c0_27, %c0_28] : memref<8x32xf32, #tpu.memory_space<vmem>>, vector<8x32xf32>
    tpu.vector_store %arg8[%c0_27, %c0_28], %42 {strides = array<i32>} : memref<8x32xf32, #tpu.memory_space<vmem>>, vector<8x32xf32>,
    %c3_i32 = arith.constant 3 : i32
    %44 = arith.cmpi eq, %arg1, %c3_i32 : i32
    %45 = arith.extui %44 : i1 to i32
    %c0_i32_29 = arith.constant 0 : i32
    %46 = arith.cmpi ne, %45, %c0_i32_29 : i32
    scf.if %46 {
      %c0_30 = arith.constant 0 : index
      %c0_31 = arith.constant 0 : index
      %47 = vector.load %arg8[%c0_30, %c0_31] : memref<8x32xf32, #tpu.memory_space<vmem>>, vector<8x32xf32>
      %c0_32 = arith.constant 0 : index
      %c0_33 = arith.constant 0 : index
      %48 = vector.load %arg5[%c0_32, %c0_33] : memref<1x32xf32, #tpu.memory_space<vmem>>, vector<1x32xf32>
      %49 = vector.broadcast %48 : vector<1x32xf32> to vector<8x32xf32>
      %50 = arith.addf %47, %49 : vector<8x32xf32>
      %51 = vector.shape_cast %50 : vector<8x32xf32> to vector<1x8x32xf32>
      %c0_34 = arith.constant 0 : index
      %c0_35 = arith.constant 0 : index
      %c0_36 = arith.constant 0 : index
      %52 = vector.load %arg7[%c0_34, %c0_35, %c0_36] : memref<1x8x32xf32, #tpu.memory_space<vmem>>, vector<1x8x32xf32>
      tpu.vector_store %arg7[%c0_34, %c0_35, %c0_36], %51 {strides = array<i32>} : memref<1x8x32xf32, #tpu.memory_space<vmem>>, vector<1x8x32xf32>,
    } else {
    }
    return
  }
  func.func @transform_0(%arg0: i32, %arg1: i32) -> (i32, i32, i32) {
    %c0_i32 = arith.constant 0 : i32
    %c0_i32_0 = arith.constant 0 : i32
    %c0_i32_1 = arith.constant 0 : i32
    return %arg0, %c0_i32, %c0_i32_0 : i32, i32, i32
  }
  func.func @transform_1(%arg0: i32, %arg1: i32) -> (i32, i32, i32, i32) {
    %c0_i32 = arith.constant 0 : i32
    %c0_i32_0 = arith.constant 0 : i32
    %c0_i32_1 = arith.constant 0 : i32
    %c0_i32_2 = arith.constant 0 : i32
    return %arg1, %c0_i32, %c0_i32_0, %c0_i32_1 : i32, i32, i32, i32
  }
  func.func @transform_2(%arg0: i32, %arg1: i32) -> (i32, i32, i32) {
    %c0_i32 = arith.constant 0 : i32
    %c0_i32_0 = arith.constant 0 : i32
    %c0_i32_1 = arith.constant 0 : i32
    return %arg1, %c0_i32, %c0_i32_0 : i32, i32, i32
  }
  func.func @transform_3(%arg0: i32, %arg1: i32) -> (i32, i32) {
    %c0_i32 = arith.constant 0 : i32
    %c0_i32_0 = arith.constant 0 : i32
    %c0_i32_1 = arith.constant 0 : i32
    return %c0_i32, %c0_i32_0 : i32, i32
  }
  func.func @transform_4(%arg0: i32, %arg1: i32) -> (i32, i32) {
    %c0_i32 = arith.constant 0 : i32
    %c0_i32_0 = arith.constant 0 : i32
    %c0_i32_1 = arith.constant 0 : i32
    return %c0_i32, %c0_i32_0 : i32, i32
  }
  func.func @transform_5(%arg0: i32, %arg1: i32) -> (i32, i32, i32) {
    %c0_i32 = arith.constant 0 : i32
    %c0_i32_0 = arith.constant 0 : i32
    %c0_i32_1 = arith.constant 0 : i32
    return %arg0, %c0_i32, %c0_i32_0 : i32, i32, i32
  }
}

</mosaic_0001>

<llo_original>
// kernel: tpu_custom_call.1
$region0: #{tpu_custom_call.1}
  #allocation0 [shape = 'u32[]', space=smem, size = 0x4, offset = 0x4, fixed_abs, tag = 'smem constant byte address 0x4 - core index']
  #allocation1 [shape = 'u32[72,128]{1,0:T(1,128)}', space=vmem, size = 0x9000, scoped, tag = 'internal scratch']
  #allocation2 [shape = 'f32[8,32]{1,0:T(8,128)}', space=vmem, size = 0x1000, scoped, tag = 'scratch operand']
  %s0 = inlined_call_operand.vmem [shape: bf16[2,8,32], index: 0, kind: input, shape index: {}]
  %s1 = inlined_call_operand.vmem [shape: bf16[4,3,32,8], index: 1, kind: input, shape index: {}]
  %s2 = inlined_call_operand.vmem [shape: bf16[4,8,32], index: 2, kind: input, shape index: {}]
  %s3 = inlined_call_operand.vmem [shape: f32[1,32], index: 3, kind: input, shape index: {}]
  %s4 = inlined_call_operand.vmem [shape: f32[8,8], index: 4, kind: input, shape index: {}]
  %s5 = inlined_call_operand.hbm [shape: f32[2,8,32], index: 5, kind: output, shape index: {}]
  %s6 = sld [smem:[#allocation0]]
  $region61: #{tpu_custom_call.1} parent=0
    _
  %s8 = ssub.s32 1, %s6
  %s9 = scalar_select 0, %s8, %s6
  $region1: #{tpu_custom_call.1} parent=0
    #allocation3 [shape = 'u8[8192]{0}', space=vmem, size = 0x2000, scoped, tag = 'output window, operand 0']
    #allocation4 [shape = 's32[2]{0}', space=sflag, size = 0x8, scoped, tag = 'scoped memory for tpu_custom_call.1']
    %10 = vsyncpa [#allocation4], 0
    %s11 = scalar_lea.sflag [#allocation4], 1
    %12 = vsyncpa %s11, 0
    loop: start=0, step=1, limit=10
    $region2: #{tpu_custom_call.1} parent=1 // loop_pre_header
      _
    $region3: #{tpu_custom_call.1} parent=1 // loop_header
      %s14 = sphi 0, %s18
      %p15 = scmp.ge.s32.totalorder %s14, 10
      %s21 = sphi 0, %s33
      %s22 = sphi 0, %s29
      %s23 = sphi 0, %s21
      %s24 = sphi 0, %s22
      %s25 = sphi 0, %s23
      %s26 = sphi 0, %s24
      %s36 = sphi 0, %s38
      %s39 = sphi 0, %s36
      %s40 = sphi 0, %s39
      %s56 = sphi 0, %s40
      %s62 = sphi 0, %s64
      %s65 = sphi 0, %s62
      %s66 = sphi 0, %s65
      %s82 = sphi 0, %s66
      %s88 = sphi 0, %s90
      %s91 = sphi 0, %s88
      %s92 = sphi 0, %s91
      %s108 = sphi 0, %s92
      %s112 = sphi 0, %s112
      %s114 = sphi 0, %s112
      %s115 = sphi 0, %s114
      %s129 = sphi 0, %s115
      %s133 = sphi 0, %s133
      %s135 = sphi 0, %s133
      %s136 = sphi 0, %s135
      %s150 = sphi 0, %s136
      %s156 = sphi 0, %s158
      %s159 = sphi 0, %s156
      %s160 = sphi 0, %s159
      %s176 = sphi 0, %s160
    $region4: #{tpu_custom_call.1} parent=1 // loop_header_branch
      %17 = sbr.rel (%p15) target = $region8
    $region5: #{tpu_custom_call.1} parent=1 // loop_body
      %s19 = ssub.s32 %s14, 1
      %s20 = ssub.s32 %s14, 2
      %s27 = sadd.s32 1, %s22
      %p28 = scmp.ge.s32.totalorder %s27, 4
      %s29 = scalar_select %p28, 0, %s27
      %s30 = sadd.s32 1, %s21
      %s31 = scalar_select %p28, %s30, %s21
      %p32 = scmp.ge.s32.totalorder %s31, 2
      %s33 = scalar_select %p32, 0, %s31
      %s34 = ssub.s32 %s21, %s33
      %p35 = scmp.eq.s32.totalorder %s34, 0
      %s37 = sadd.s32 %s36, 1
      %s38 = scalar_select %p35, %s36, %s37
      %p41 = pneg %p35
      %p42 = scmp.eq.s32.totalorder %s14, 7
      %p43 = por %p41, %p42
      %p44 = scmp.ne.s32.totalorder %s36, %s39
      %p45 = scmp.eq.s32.totalorder %s14, 0
      %p46 = por %p44, %p45
      %p47 = scmp.ne.s32.totalorder %s36, %s39
      %p48 = scmp.eq.s32.totalorder %s19, 7
      %p49 = por %p47, %p48
      %p50 = scmp.ne.s32.totalorder %s39, %s40
      %p51 = scmp.eq.s32.totalorder %s19, 0
      %p52 = por %p50, %p51
      %p53 = scmp.ne.s32.totalorder %s39, %s40
      %p54 = scmp.eq.s32.totalorder %s20, 7
      %p55 = por %p53, %p54
      %p57 = scmp.ne.s32.totalorder %s40, %s56
      %p58 = scmp.eq.s32.totalorder %s20, 0
      %p59 = por %p57, %p58
      %s60 = ssub.s32 %s22, %s29
      %p61 = scmp.eq.s32.totalorder %s60, 0
      %s63 = sadd.s32 %s62, 1
      %s64 = scalar_select %p61, %s62, %s63
      %p67 = pneg %p61
      %p68 = scmp.eq.s32.totalorder %s14, 7
      %p69 = por %p67, %p68
      %p70 = scmp.ne.s32.totalorder %s62, %s65
      %p71 = scmp.eq.s32.totalorder %s14, 0
      %p72 = por %p70, %p71
      %p73 = scmp.ne.s32.totalorder %s62, %s65
      %p74 = scmp.eq.s32.totalorder %s19, 7
      %p75 = por %p73, %p74
      %p76 = scmp.ne.s32.totalorder %s65, %s66
      %p77 = scmp.eq.s32.totalorder %s19, 0
      %p78 = por %p76, %p77
      %p79 = scmp.ne.s32.totalorder %s65, %s66
      %p80 = scmp.eq.s32.totalorder %s20, 7
      %p81 = por %p79, %p80
      %p83 = scmp.ne.s32.totalorder %s66, %s82
      %p84 = scmp.eq.s32.totalorder %s20, 0
      %p85 = por %p83, %p84
      %s86 = ssub.s32 %s22, %s29
      %p87 = scmp.eq.s32.totalorder %s86, 0
      %s89 = sadd.s32 %s88, 1
      %s90 = scalar_select %p87, %s88, %s89
      %p93 = pneg %p87
      %p94 = scmp.eq.s32.totalorder %s14, 7
      %p95 = por %p93, %p94
      %p96 = scmp.ne.s32.totalorder %s88, %s91
      %p97 = scmp.eq.s32.totalorder %s14, 0
      %p98 = por %p96, %p97
      %p99 = scmp.ne.s32.totalorder %s88, %s91
      %p100 = scmp.eq.s32.totalorder %s19, 7
      %p101 = por %p99, %p100
      %p102 = scmp.ne.s32.totalorder %s91, %s92
      %p103 = scmp.eq.s32.totalorder %s19, 0
      %p104 = por %p102, %p103
      %p105 = scmp.ne.s32.totalorder %s91, %s92
      %p106 = scmp.eq.s32.totalorder %s20, 7
      %p107 = por %p105, %p106
      %p109 = scmp.ne.s32.totalorder %s92, %s108
      %p110 = scmp.eq.s32.totalorder %s20, 0
      %p111 = por %p109, %p110
      %s113 = sadd.s32 %s112, 1
      %p116 = scmp.eq.s32.totalorder %s14, 7
      %p117 = scmp.ne.s32.totalorder %s112, %s114
      %p118 = scmp.eq.s32.totalorder %s14, 0
      %p119 = por %p117, %p118
      %p120 = scmp.ne.s32.totalorder %s112, %s114
      %p121 = scmp.eq.s32.totalorder %s19, 7
      %p122 = por %p120, %p121
      %p123 = scmp.ne.s32.totalorder %s114, %s115
      %p124 = scmp.eq.s32.totalorder %s19, 0
      %p125 = por %p123, %p124
      %p126 = scmp.ne.s32.totalorder %s114, %s115
      %p127 = scmp.eq.s32.totalorder %s20, 7
      %p128 = por %p126, %p127
      %p130 = scmp.ne.s32.totalorder %s115, %s129
      %p131 = scmp.eq.s32.totalorder %s20, 0
      %p132 = por %p130, %p131
      %s134 = sadd.s32 %s133, 1
      %p137 = scmp.eq.s32.totalorder %s14, 7
      %p138 = scmp.ne.s32.totalorder %s133, %s135
      %p139 = scmp.eq.s32.totalorder %s14, 0
      %p140 = por %p138, %p139
      %p141 = scmp.ne.s32.totalorder %s133, %s135
      %p142 = scmp.eq.s32.totalorder %s19, 7
      %p143 = por %p141, %p142
      %p144 = scmp.ne.s32.totalorder %s135, %s136
      %p145 = scmp.eq.s32.totalorder %s19, 0
      %p146 = por %p144, %p145
      %p147 = scmp.ne.s32.totalorder %s135, %s136
      %p148 = scmp.eq.s32.totalorder %s20, 7
      %p149 = por %p147, %p148
      %p151 = scmp.ne.s32.totalorder %s136, %s150
      %p152 = scmp.eq.s32.totalorder %s20, 0
      %p153 = por %p151, %p152
      %s154 = ssub.s32 %s21, %s33
      %p155 = scmp.eq.s32.totalorder %s154, 0
      %s157 = sadd.s32 %s156, 1
      %s158 = scalar_select %p155, %s156, %s157
      %p161 = pneg %p155
      %p162 = scmp.eq.s32.totalorder %s14, 7
      %p163 = por %p161, %p162
      %p164 = scmp.ne.s32.totalorder %s156, %s159
      %p165 = scmp.eq.s32.totalorder %s14, 0
      %p166 = por %p164, %p165
      %p167 = scmp.ne.s32.totalorder %s156, %s159
      %p168 = scmp.eq.s32.totalorder %s19, 7
      %p169 = por %p167, %p168
      %p170 = scmp.ne.s32.totalorder %s159, %s160
      %p171 = scmp.eq.s32.totalorder %s19, 0
      %p172 = por %p170, %p171
      %p173 = scmp.ne.s32.totalorder %s159, %s160
      %p174 = scmp.eq.s32.totalorder %s20, 7
      %p175 = por %p173, %p174
      %p177 = scmp.ne.s32.totalorder %s160, %s176
      %p178 = scmp.eq.s32.totalorder %s20, 0
      %p179 = por %p177, %p178
      %p180 = scmp.le.s32.totalorder 1, %s14
      %p181 = scmp.lt.s32.totalorder %s14, 9
      %p182 = pnand %p180, %p181
      %p183 = pneg %p182
      // Predicated region
      $region9: #{tpu_custom_call.1} parent=5 // pred_check
        _
      $region10: #{tpu_custom_call.1} parent=5 // pred_check_branch
        %185 = sbr.rel (%p182) target = $region12
      $region11: #{tpu_custom_call.1} parent=5 // pred_region
        %s186 = ssub.s32 %s14, 1
        // Predicated region
        $region13: #{tpu_custom_call.1} parent=11 // pred_check
          %p187 = pneg %p125
        $region14: #{tpu_custom_call.1} parent=11 // pred_check_branch
          %189 = sbr.rel (%p187) target = $region16
        $region15: #{tpu_custom_call.1} parent=11 // pred_region
          _
        $region16: #{tpu_custom_call.1} parent=11 // pred_fallthru
          _
        // Predicated region
        $region17: #{tpu_custom_call.1} parent=11 // pred_check
          %p190 = pneg %p146
        $region18: #{tpu_custom_call.1} parent=11 // pred_check_branch
          %192 = sbr.rel (%p190) target = $region20
        $region19: #{tpu_custom_call.1} parent=11 // pred_region
          _
        $region20: #{tpu_custom_call.1} parent=11 // pred_fallthru
          _
      $region12: #{tpu_custom_call.1} parent=5 // pred_fallthru
        _
      %p193 = scmp.lt.s32.totalorder %s14, 8
      // Predicated region
      $region21: #{tpu_custom_call.1} parent=5 // pred_check
        %p194 = pneg %p193
      $region22: #{tpu_custom_call.1} parent=5 // pred_check_branch
        %196 = sbr.rel (%p194) target = $region24
      $region23: #{tpu_custom_call.1} parent=5 // pred_region
        // Predicated region
        $region25: #{tpu_custom_call.1} parent=23 // pred_check
          %p197 = pneg %p46
        $region26: #{tpu_custom_call.1} parent=23 // pred_check_branch
          %199 = sbr.rel (%p197) target = $region28
        $region27: #{tpu_custom_call.1} parent=23 // pred_region
          %p200 = scmp.lt.s32.totalorder %s21, 1
          %s201 = scalar_select %p200, %s21, 1
          %s202 = smul.addr %s201, 4
          %s203 = scalar_lea.vmem %s0, %s202
        $region28: #{tpu_custom_call.1} parent=23 // pred_fallthru
          _
        // Predicated region
        $region29: #{tpu_custom_call.1} parent=23 // pred_check
          %p204 = pneg %p72
        $region30: #{tpu_custom_call.1} parent=23 // pred_check_branch
          %206 = sbr.rel (%p204) target = $region32
        $region31: #{tpu_custom_call.1} parent=23 // pred_region
          %p207 = scmp.lt.s32.totalorder %s22, 3
          %s208 = scalar_select %p207, %s22, 3
          %s209 = smul.addr %s208, 12
          %s210 = smul.addr %s209, 4
          %s211 = scalar_lea.vmem %s1, %s210
        $region32: #{tpu_custom_call.1} parent=23 // pred_fallthru
          _
        // Predicated region
        $region33: #{tpu_custom_call.1} parent=23 // pred_check
          %p212 = pneg %p98
        $region34: #{tpu_custom_call.1} parent=23 // pred_check_branch
          %214 = sbr.rel (%p212) target = $region36
        $region35: #{tpu_custom_call.1} parent=23 // pred_region
          %p215 = scmp.lt.s32.totalorder %s22, 3
          %s216 = scalar_select %p215, %s22, 3
          %s217 = smul.addr %s216, 4
          %s218 = scalar_lea.vmem %s2, %s217
        $region36: #{tpu_custom_call.1} parent=23 // pred_fallthru
          _
      $region24: #{tpu_custom_call.1} parent=5 // pred_fallthru
        _
      %p219 = scmp.le.s32.totalorder 1, %s14
      %p220 = scmp.lt.s32.totalorder %s14, 9
      %p221 = pnand %p219, %p220
      %p222 = pneg %p221
      // Predicated region
      $region37: #{tpu_custom_call.1} parent=5 // pred_check
        _
      $region38: #{tpu_custom_call.1} parent=5 // pred_check_branch
        %224 = sbr.rel (%p221) target = $region40
      $region39: #{tpu_custom_call.1} parent=5 // pred_region
        %s225 = ssub.s32 %s14, 1
        %p226 = scmp.lt.s32.totalorder %s23, 1
        %s227 = scalar_select %p226, %s23, 1
        %s228 = smul.addr %s227, 4
        %s229 = scalar_lea.vmem %s0, %s228
        %p230 = pneg %p52
        %p231 = pneg %p49
        %p232 = scmp.lt.s32.totalorder %s24, 3
        %s233 = scalar_select %p232, %s24, 3
        %s234 = smul.addr %s233, 12
        %s235 = smul.addr %s234, 4
        %s236 = scalar_lea.vmem %s1, %s235
        %p237 = pneg %p78
        %p238 = pneg %p75
        %p239 = scmp.lt.s32.totalorder %s24, 3
        %s240 = scalar_select %p239, %s24, 3
        %s241 = smul.addr %s240, 4
        %s242 = scalar_lea.vmem %s2, %s241
        %p243 = pneg %p104
        %p244 = pneg %p101
        %p245 = pneg %p125
        %p246 = pneg %p122
        %p247 = pneg %p146
        %p248 = pneg %p143
        %p249 = pneg %p172
        %p250 = pneg %p169
        %s251 = sand.u32 %s159, 1
        %s252 = scalar_lea.sflag [#allocation4], %s251
        %s253 = sand.u32 %s159, 1
        %s254 = smul.addr %s253, 8
        %s255 = scalar_lea.vmem [#allocation3], %s254
        %p256 = scmp.lt.s32.totalorder %s23, 1
        %s257 = scalar_select %p256, %s23, 1
        %s258 = smul.addr %s257, 4
        %s259 = scalar_lea.vmem %s0, %s258
        %p260 = scmp.lt.s32.totalorder %s24, 3
        %s261 = scalar_select %p260, %s24, 3
        %s262 = smul.addr %s261, 12
        %s263 = smul.addr %s262, 4
        %s264 = scalar_lea.vmem %s1, %s263
        %p265 = scmp.lt.s32.totalorder %s24, 3
        %s266 = scalar_select %p265, %s24, 3
        %s267 = smul.addr %s266, 4
        %s268 = scalar_lea.vmem %s2, %s267
        %p270 = scmp.eq.s32.totalorder %s24, 0
        // Predicated region
        $region41: #{tpu_custom_call.1} parent=39 // pred_check
          %p271 = pneg %p270
        $region42: #{tpu_custom_call.1} parent=39 // pred_check_branch
          %273 = sbr.rel (%p271) target = $region44
        $region43: #{tpu_custom_call.1} parent=39 // pred_region
          %vm274 = vcmask 261120
          %275 = vst.msk [vmem:[#allocation2] sm:$0xff] %vm274, 0.0
        $region44: #{tpu_custom_call.1} parent=39 // pred_fallthru
          _
        %v276 = vld [vmem:[%s259] sm:$0xf]
        %v277 = vld [vmem:[%s264] sm:$0xf]
        %v278 = vld [vmem:[%s264 + $0x4] sm:$0xf]
        %v279 = vld [vmem:[%s264 + $0x8] sm:$0xf]
        %v280 = vld [vmem:[%s264 + $0xc] sm:$0xf]
        %v285 = vunpack.c.l.b16 %v277
        %v286 = vunpack.c.l.b16 %v278
        %v287 = vunpack.c.l.b16 %v279
        %v288 = vunpack.c.l.b16 %v280
        %v289 = vpack.c.b16 %v286, %v285
        %v290 = vpack.c.b16 %v288, %v287
        %vm293 = vcmask 261120
        %v295 = vsel %vm293, %v276, 0
        %297 = vmatpush.bf16.msra.mxu0 0
        %298 = vmatpush.bf16.msra.mxu0 0
        %299 = vmatpush.bf16.msra.mxu0 0
        %300 = vmatpush.bf16.msra.mxu0 0
        %301 = vmatpush.bf16.msra.mxu0 0
        %302 = vmatpush.bf16.msra.mxu0 0
        %303 = vmatpush.bf16.msra.mxu0 %v290
        %304 = vmatpush.bf16.msra.mxu0 %v289
        %305 = vmatmul.bf16.gmra.mxu0 %v295
        %v306 = vpop.f32.mrf.mxu0
        %v307 = vadd.f32 0.0, %v306
        %v308 = vpop.f32.mrf.mxu0
        %309 = vdwg.mxu0
        %s310 = scalar_lea.vmem %s264, 16
        %v311 = vld [vmem:[%s310] sm:$0xf]
        %v312 = vld [vmem:[%s310 + $0x4] sm:$0xf]
        %v313 = vld [vmem:[%s310 + $0x8] sm:$0xf]
        %v314 = vld [vmem:[%s310 + $0xc] sm:$0xf]
        %v319 = vunpack.c.l.b16 %v311
        %v320 = vunpack.c.l.b16 %v312
        %v321 = vunpack.c.l.b16 %v313
        %v322 = vunpack.c.l.b16 %v314
        %v323 = vpack.c.b16 %v320, %v319
        %v324 = vpack.c.b16 %v322, %v321
        %327 = vmatpush.bf16.msra.mxu0 0
        %328 = vmatpush.bf16.msra.mxu0 0
        %329 = vmatpush.bf16.msra.mxu0 0
        %330 = vmatpush.bf16.msra.mxu0 0
        %331 = vmatpush.bf16.msra.mxu0 0
        %332 = vmatpush.bf16.msra.mxu0 0
        %333 = vmatpush.bf16.msra.mxu0 %v324
        %334 = vmatpush.bf16.msra.mxu0 %v323
        %335 = vmatmul.bf16.gmra.mxu0 %v295
        %v336 = vpop.f32.mrf.mxu0
        %v337 = vadd.f32 0.0, %v336
        %v338 = vpop.f32.mrf.mxu0
        %339 = vdwg.mxu0
        %s340 = scalar_lea.vmem %s264, 32
        %v341 = vld [vmem:[%s340] sm:$0xf]
        %v342 = vld [vmem:[%s340 + $0x4] sm:$0xf]
        %v343 = vld [vmem:[%s340 + $0x8] sm:$0xf]
        %v344 = vld [vmem:[%s340 + $0xc] sm:$0xf]
        %v349 = vunpack.c.l.b16 %v341
        %v350 = vunpack.c.l.b16 %v342
        %v351 = vunpack.c.l.b16 %v343
        %v352 = vunpack.c.l.b16 %v344
        %v353 = vpack.c.b16 %v350, %v349
        %v354 = vpack.c.b16 %v352, %v351
        %357 = vmatpush.bf16.msra.mxu0 0
        %358 = vmatpush.bf16.msra.mxu0 0
        %359 = vmatpush.bf16.msra.mxu0 0
        %360 = vmatpush.bf16.msra.mxu0 0
        %361 = vmatpush.bf16.msra.mxu0 0
        %362 = vmatpush.bf16.msra.mxu0 0
        %363 = vmatpush.bf16.msra.mxu0 %v354
        %364 = vmatpush.bf16.msra.mxu0 %v353
        %365 = vmatmul.bf16.gmra.mxu0 %v295
        %v366 = vpop.f32.mrf.mxu0
        %v367 = vadd.f32 0.0, %v366
        %v368 = vpop.f32.mrf.mxu0
        %369 = vdwg.mxu0
        %v370 = vpack.c.bf16 %v307, %v307
        %v371 = vpack.c.bf16 %v337, %v337
        %v372 = vpack.c.bf16 %v367, %v367
        %v373 = vld [vmem:[%s4] sm:$0xff]
        %vm374 = vcmask 64512
        %v376 = vsel %vm374, %v370, 0
        %v379 = vsel %vm374, %v371, 0
        %381 = vmatpush.bf16.xpose.msra.mxu0 0
        %382 = vmatpush.bf16.xpose.msra.mxu0 0
        %383 = vmatpush.bf16.xpose.msra.mxu0 0
        %384 = vmatpush.bf16.xpose.msra.mxu0 0
        %385 = vmatpush.bf16.xpose.msra.mxu0 0
        %386 = vmatpush.bf16.xpose.msra.mxu0 0
        %387 = vmatpush.bf16.xpose.msra.mxu0 0
        %388 = vmatpush.bf16.xpose.msra.mxu0 %v379
        %389 = vmatmul.bf16.gmra.mxu0 %v376
        %v390 = vpop.f32.mrf.mxu0
        %v391 = vadd.f32 %v373, %v390
        %v392 = vpop.f32.mrf.mxu0
        %393 = vdwg.mxu0
        %v394 = vsel %vm374, %v391, -inf
        %395 = vmax.xlane.f32.xlu0 %v394
        %v396 = vpop.xlane.xlu0 %395
        %v397 = vsub.f32 %v391, %v396
        %v398 = vmul.f32 %v397, 1.442695
        %v399 = vpow.pop %v398
        %v400 = vsel %vm374, %v399, 0.0
        %401 = vadd.xlane.f32.xlu0 %v400
        %v402 = vpop.xlane.xlu0 %401
        %v403 = vpack.c.bf16 %v399, %v399
        %v405 = vsel %vm374, %v403, 0
        %vm407 = vcmask 1043456
        %v409 = vsel %vm407, %v372, 0
        %411 = vmatpush.bf16.msra.mxu0 0
        %412 = vmatpush.bf16.msra.mxu0 0
        %413 = vmatpush.bf16.msra.mxu0 0
        %414 = vmatpush.bf16.msra.mxu0 0
        %415 = vmatpush.bf16.msra.mxu0 0
        %416 = vmatpush.bf16.msra.mxu0 0
        %417 = vmatpush.bf16.msra.mxu0 0
        %418 = vmatpush.bf16.msra.mxu0 %v409
        %419 = vmatmul.bf16.gmra.mxu0 %v405
        %v420 = vpop.f32.mrf.mxu0
        %v421 = vadd.f32 0.0, %v420
        %v422 = vpop.f32.mrf.mxu0
        %423 = vdwg.mxu0
        %v424 = vrcp.pop %v402
        %v425 = vmul.f32 %v421, %v424
        %v426 = vld [vmem:[#allocation2] sm:$0xff]
        %v427 = vpack.c.bf16 %v425, %v425
        %v428 = vld [vmem:[%s268] sm:$0xf]
        %v430 = vsel %vm374, %v427, 0
        %v433 = vsel %vm407, %v428, 0
        %435 = vmatpush.bf16.msra.mxu0 0
        %436 = vmatpush.bf16.msra.mxu0 0
        %437 = vmatpush.bf16.msra.mxu0 0
        %438 = vmatpush.bf16.msra.mxu0 0
        %439 = vmatpush.bf16.msra.mxu0 0
        %440 = vmatpush.bf16.msra.mxu0 0
        %441 = vmatpush.bf16.msra.mxu0 0
        %442 = vmatpush.bf16.msra.mxu0 %v433
        %443 = vmatmul.bf16.gmra.mxu0 %v430
        %v444 = vpop.f32.mrf.mxu0
        %v445 = vadd.f32 0.0, %v444
        %v446 = vpop.f32.mrf.mxu0
        %447 = vdwg.mxu0
        %v448 = vadd.f32 %v426, %v445
        %449 = vst.msk [vmem:[#allocation2] sm:$0xff] %vm293, %v448
        %p450 = scmp.eq.s32.totalorder %s24, 3
        // Predicated region
        $region45: #{tpu_custom_call.1} parent=39 // pred_check
          %p451 = pneg %p450
        $region46: #{tpu_custom_call.1} parent=39 // pred_check_branch
          %453 = sbr.rel (%p451) target = $region48
        $region47: #{tpu_custom_call.1} parent=39 // pred_region
          %v454 = vld [vmem:[#allocation2] sm:$0xff]
          %v455 = vld [vmem:[%s3] sm:$0x1]
          %v457 = vperm.slane %v455, 0
          %v459 = vadd.f32 %v454, %v457
          %460 = vst.msk [vmem:[%s255] sm:$0xff] %vm293, %v459
        $region48: #{tpu_custom_call.1} parent=39 // pred_fallthru
          _
        %s461 = sand.u32 %s159, 1
        %s462 = scalar_lea.sflag [#allocation4], %s461
        %s463 = sand.u32 %s159, 1
        %s464 = smul.addr %s463, 8
        %s465 = scalar_lea.vmem [#allocation3], %s464
        // Predicated region
        $region49: #{tpu_custom_call.1} parent=39 // pred_check
          %p466 = pneg %p169
        $region50: #{tpu_custom_call.1} parent=39 // pred_check_branch
          %468 = sbr.rel (%p466) target = $region52
        $region51: #{tpu_custom_call.1} parent=39 // pred_region
          %470 = vsyncadd %s462, 0
          %s471 = smul.addr %s23, 8
          %s472 = scalar_lea.hbm %s5, %s471
          %s474 = sshll.u32 %s465, 4
          %s475 = int_to_ptr.vmem [resolvable:$true] %s474
          %s476 = sshll.u32 %s472, 4
          %s477 = int_to_ptr.hbm [resolvable:$true] %s476
          %479 = dma.vmem_to_hbm [thread:$0]  %s475, 128, %s477, %s462
        $region52: #{tpu_custom_call.1} parent=39 // pred_fallthru
          _
      $region40: #{tpu_custom_call.1} parent=5 // pred_fallthru
        _
      %p480 = scmp.le.s32.totalorder 2, %s14
      // Predicated region
      $region53: #{tpu_custom_call.1} parent=5 // pred_check
        %p481 = pneg %p480
      $region54: #{tpu_custom_call.1} parent=5 // pred_check_branch
        %483 = sbr.rel (%p481) target = $region56
      $region55: #{tpu_custom_call.1} parent=5 // pred_region
        %s484 = ssub.s32 %s14, 2
        // Predicated region
        $region57: #{tpu_custom_call.1} parent=55 // pred_check
          %p485 = pneg %p175
        $region58: #{tpu_custom_call.1} parent=55 // pred_check_branch
          %487 = sbr.rel (%p485) target = $region60
        $region59: #{tpu_custom_call.1} parent=55 // pred_region
          %s488 = sand.u32 %s160, 1
          %s489 = scalar_lea.sflag [#allocation4], %s488
          %s490 = sand.u32 %s160, 1
          %s491 = smul.addr %s490, 8
          %s492 = scalar_lea.vmem [#allocation3], %s491
          %494 = dma.done %s489, 128
        $region60: #{tpu_custom_call.1} parent=55 // pred_fallthru
          _
      $region56: #{tpu_custom_call.1} parent=5 // pred_fallthru
        _
    $region6: #{tpu_custom_call.1} parent=1 // loop_footer
      %s18 = sadd.s32 1, %s14
    $region7: #{tpu_custom_call.1} parent=1 // loop_footer_branch
      %13 = sbr.rel target = $region3
    $region8: #{tpu_custom_call.1} parent=1 // loop_exit
      _
    %495 = vsyncpa [#allocation4], 1
    %s496 = scalar_lea.sflag [#allocation4], 1
    %497 = vsyncpa %s496, 1

</llo_original>
